<compile_context>
chip_gen: v6e
topology: v6e:2x2x1
jax: 0.10.0
libtpu: 0.0.40
codegen_flags: <defaults>
</compile_context>

<pallas_src>
import jax
import jax.numpy as jnp
from jax.experimental import pallas as pl
from jax.experimental.pallas import tpu as pltpu


# --------------------------------------------------------------------------
# Kernel A: backbone matmul (w0 resident) + Linear1 + BN partial statistics
# --------------------------------------------------------------------------
def backbone_proj1_kernel(x_ref, w0_ref, b0_ref, w1_ref,
                          h_ref, sum_ref, sumsq_ref):
    # Cast the activation tile in VMEM (avoids a separate HBM cast pass on x).
    x_bf = x_ref[...].astype(jnp.bfloat16)
    # Stand-in backbone epilogue: Linear(L->D) + bias + ReLU, f32 accumulation.
    feat = jnp.maximum(
        jnp.dot(x_bf, w0_ref[...], preferred_element_type=jnp.float32)
        + b0_ref[...], 0.0)
    # Projection-head Linear1 (bias b1 omitted: BatchNorm with batch
    # statistics cancels any per-feature constant offset exactly).
    h = jnp.dot(feat.astype(jnp.bfloat16), w1_ref[...],
                preferred_element_type=jnp.float32)
    # Per-batch-tile BN partial statistics from the un-quantized f32 h.
    sum_ref[0] = jnp.sum(h, axis=0, keepdims=True)
    sumsq_ref[0] = jnp.sum(h * h, axis=0, keepdims=True)
    # h intermediate stored bf16 (halves writeback here and read in kernel B).
    h_ref[...] = h.astype(h_ref.dtype)


# --------------------------------------------------------------------------
# Kernel B: BatchNorm apply + ReLU + Linear2 (lane-dense output)
# --------------------------------------------------------------------------
def bn_proj2_kernel(h_ref, scale_ref, shift_ref, w2_ref, b2_ref, out_ref):
    y = jnp.maximum(h_ref[...].astype(jnp.float32) * scale_ref[...]
                    + shift_ref[...], 0.0)
    out_ref[...] = (jnp.dot(y.astype(jnp.bfloat16), w2_ref[...],
                            preferred_element_type=jnp.float32)
                    + b2_ref[...])


# --------------------------------------------------------------------------
# Wrapper
# --------------------------------------------------------------------------
def _round_up(a, m):
    return ((a + m - 1) // m) * m


def dfsimclr_forward(x, params, *, tb=128, eps=1e-5):
    """x: (B, L) float32 (flattened NCL with C=1). Returns (B, out_dim) f32."""
    w0, b0, w1, b1, gamma, beta, w2, b2 = params
    del b1  # mathematically absorbed by BatchNorm (batch statistics)
    B, L = x.shape
    D = w1.shape[0]
    OUT = w2.shape[1]

    assert D % 128 == 0, "dim_mlp must be a multiple of 128"
    TB = min(tb, B)
    assert B % TB == 0 and TB % 8 == 0, "batch must divide the batch tile"
    nb = B // TB
    # Keep nb >= 2 where possible so v7x's two TensorCores both get work
    # via the "parallel" batch axis.
    if nb == 1 and TB >= 16 and (TB // 2) % 8 == 0:
        TB //= 2
        nb = 2

    # Pad the reduction length to a lane multiple; zero rows in both x and w0
    # contribute exactly zero to the matmul, so this is exact.
    Lp = _round_up(L, 128)
    if Lp != L:
        x = jnp.pad(x, ((0, 0), (0, Lp - L)))
        w0 = jnp.pad(w0, ((0, Lp - L), (0, 0)))

    # Lane-dense output: pad out_dim up to a multiple of 128 (unmasked stores).
    OUTP = _round_up(OUT, 128)
    if OUTP != OUT:
        w2 = jnp.pad(w2, ((0, 0), (0, OUTP - OUT)))
        b2 = jnp.pad(b2, ((0, 0), (0, OUTP - OUT)))

    # Weights pre-cast to bf16 (small, single pass; halves the resident-w0
    # VMEM footprint).  The large activation x stays f32 in HBM and is cast
    # per-tile inside kernel A.
    w0_bf = w0.astype(jnp.bfloat16)
    w1_bf = w1.astype(jnp.bfloat16)
    w2_bf = w2.astype(jnp.bfloat16)

    # VMEM footprint estimates (double-buffered blocks + in-kernel temps),
    # with 2x headroom, floored at the smallest per-generation default and
    # capped under v7x's 64 MiB physical VMEM.
    vmem_a = (2 * TB * Lp * 4        # x blocks (f32)
              + 2 * Lp * D * 2       # w0 (bf16, grid-invariant)
              + 2 * D * D * 2        # w1 (bf16)
              + 2 * D * 4            # b0
              + 2 * TB * D * 2       # h output blocks (bf16)
              + 8 * D * 4            # psum / psumsq blocks
              + TB * Lp * 2          # x bf16 temp
              + 2 * TB * D * 4)      # feat / h f32 temps
    vmem_limit_a = int(min(max(2 * vmem_a, 16 << 20), 60 << 20))

    vmem_b = (2 * TB * D * 2 + 4 * D * 4 + 2 * D * OUTP * 2 + 2 * OUTP * 4
              + 2 * TB * OUTP * 4 + TB * D * 4 + TB * OUTP * 4)
    vmem_limit_b = int(min(max(2 * vmem_b, 16 << 20), 60 << 20))

    cost_a = pl.CostEstimate(
        flops=2 * B * Lp * D + 2 * B * D * D + 4 * B * D,
        transcendentals=0,
        bytes_accessed=(B * Lp * 4 + Lp * D * 2 + D * 4 + D * D * 2
                        + B * D * 2 + 2 * nb * D * 4),
    )

    h, psum, psumsq = pl.pallas_call(
        backbone_proj1_kernel,
        out_shape=(
            jax.ShapeDtypeStruct((B, D), jnp.bfloat16),     # h' (pre-BN, bf16)
            jax.ShapeDtypeStruct((nb, 1, D), jnp.float32),  # per-tile sum
            jax.ShapeDtypeStruct((nb, 1, D), jnp.float32),  # per-tile sum sq
        ),
        grid=(nb,),
        in_specs=[
            pl.BlockSpec((TB, Lp), lambda bi: (bi, 0)),     # x tile (f32)
            pl.BlockSpec((Lp, D), lambda bi: (0, 0)),       # w0 resident
            pl.BlockSpec((1, D), lambda bi: (0, 0)),        # b0 (invariant)
            pl.BlockSpec((D, D), lambda bi: (0, 0)),        # w1 (invariant)
        ],
        out_specs=[
            pl.BlockSpec((TB, D), lambda bi: (bi, 0)),
            pl.BlockSpec((1, 1, D), lambda bi: (bi, 0, 0)),
            pl.BlockSpec((1, 1, D), lambda bi: (bi, 0, 0)),
        ],
        compiler_params=pltpu.CompilerParams(
            dimension_semantics=("parallel",),
            vmem_limit_bytes=vmem_limit_a),
        cost_estimate=cost_a,
    )(x, w0_bf, b0, w1_bf)

    # BatchNorm1d (training mode, biased variance) from per-tile partial sums,
    # reduced in plain JAX (tiny (nb, D) tensors).  Fold gamma / beta into a
    # single per-feature scale & shift (f32 throughout).
    # NOTE: E[h^2]-E[h]^2 can cancel if |mean| >> std; clamped at 0 below.
    s = jnp.sum(psum[:, 0, :], axis=0)
    ss = jnp.sum(psumsq[:, 0, :], axis=0)
    mu = s / B
    var = jnp.maximum(ss / B - mu * mu, 0.0)
    inv = jax.lax.rsqrt(var + eps)
    scale = (gamma[0] * inv)[None, :]                 # (1, D)
    shift = (beta[0] - mu * gamma[0] * inv)[None, :]  # (1, D)

    cost_b = pl.CostEstimate(
        flops=2 * B * D * OUTP + 4 * B * D,
        transcendentals=0,
        bytes_accessed=(B * D * 2 + 2 * D * 4 + D * OUTP * 2 + OUTP * 4
                        + B * OUTP * 4),
    )

    out = pl.pallas_call(
        bn_proj2_kernel,
        out_shape=jax.ShapeDtypeStruct((B, OUTP), jnp.float32),
        grid=(nb,),
        in_specs=[
            pl.BlockSpec((TB, D), lambda bi: (bi, 0)),       # h' (bf16)
            pl.BlockSpec((1, D), lambda bi: (0, 0)),         # BN scale
            pl.BlockSpec((1, D), lambda bi: (0, 0)),         # BN shift
            pl.BlockSpec((D, OUTP), lambda bi: (0, 0)),      # w2 (invariant)
            pl.BlockSpec((1, OUTP), lambda bi: (0, 0)),      # b2
        ],
        out_specs=pl.BlockSpec((TB, OUTP), lambda bi: (bi, 0)),
        compiler_params=pltpu.CompilerParams(
            dimension_semantics=("parallel",),
            vmem_limit_bytes=vmem_limit_b),
        cost_estimate=cost_b,
    )(h, scale, shift, w2_bf, b2)

    return out[:, :OUT]


# --------------------------------------------------------------------------
# Params & references
# --------------------------------------------------------------------------
def init_params(key, L, D, out_dim):
    """Linear weights ~ U(-1/sqrt(fan_in), 1/sqrt(fan_in)); BN gamma=1, beta=0."""
    k0, k1, k2, k3, k4, k5 = jax.random.split(key, 6)
    u = lambda k, shape, fan_in: jax.random.uniform(
        k, shape, jnp.float32, -1.0 / jnp.sqrt(fan_in), 1.0 / jnp.sqrt(fan_in))
    w0 = u(k0, (L, D), L)
    b0 = u(k1, (1, D), L)
    w1 = u(k2, (D, D), D)
    b1 = u(k3, (1, D), D)      # present in the module; BN cancels it exactly
    gamma = jnp.ones((1, D), jnp.float32)
    beta = jnp.zeros((1, D), jnp.float32)
    w2 = u(k4, (D, out_dim), D)
    b2 = u(k5, (1, out_dim), D)
    return (w0, b0, w1, b1, gamma, beta, w2, b2)


def reference_forward_f32(x, params):
    """Pure-f32 JAX reference with the module's exact semantics."""
    w0, b0, w1, b1, gamma, beta, w2, b2 = params
    feat = jnp.maximum(x @ w0 + b0, 0.0)
    h = feat @ w1 + b1
    mu = h.mean(axis=0, keepdims=True)
    var = ((h - mu) ** 2).mean(axis=0, keepdims=True)
    y = jnp.maximum((h - mu) / jnp.sqrt(var + 1e-5) * gamma + beta, 0.0)
    return y @ w2 + b2


def reference_forward_mixed(x, params):
    """Reference mirroring the kernel's precision policy (bf16 matmul operands,
    f32 accumulation, f32 BN stats from un-quantized h, bf16 h storage)."""
    w0, b0, w1, b1, gamma, beta, w2, b2 = params
    bf = jnp.bfloat16
    mm = lambda a, b: jnp.dot(a.astype(bf), b.astype(bf),
                              preferred_element_type=jnp.float32)
    feat = jnp.maximum(mm(x, w0) + b0, 0.0)
    h = mm(feat, w1)                       # b1 cancelled by batch-stat BN
    mu = h.mean(axis=0, keepdims=True)
    var = jnp.maximum((h * h).mean(axis=0, keepdims=True) - mu * mu, 0.0)
    inv = jax.lax.rsqrt(var + 1e-5)
    h_q = h.astype(bf).astype(jnp.float32)  # kernel stores h as bf16
    y = jnp.maximum(h_q * (gamma * inv) + (beta - mu * gamma * inv), 0.0)
    return mm(y, w2) + b2


if __name__ == "__main__":
    # Small stand-ins for the real (5000,) -> (512,) -> (128,) sizes.
    # L=500 and OUT=96 deliberately exercise the L / out_dim padding paths.
    B, C, L, D, OUT = 64, 1, 500, 256, 96

    key = jax.random.PRNGKey(0)
    kx, kp = jax.random.split(key)
    x_ncl = jax.random.normal(kx, (B, C, L), jnp.float32)  # NCL input, C=1
    x = x_ncl.reshape(B, L)
    params = init_params(kp, L, D, OUT)

    # Small batch tile so the test exercises the multi-tile parallel batch
    # grid (nb=4); real sizes use tb=128 (or 256 on v6e/v7x).
    out = jax.block_until_ready(dfsimclr_forward(x, params, tb=16))

    ref_mixed = reference_forward_mixed(x, params)
    ref_f32 = reference_forward_f32(x, params)

    assert out.shape == (B, OUT)
    assert jnp.allclose(out, ref_mixed, atol=3e-3, rtol=3e-3), \
        float(jnp.max(jnp.abs(out - ref_mixed)))
    assert jnp.allclose(out, ref_f32, atol=1e-1, rtol=1e-1), \
        float(jnp.max(jnp.abs(out - ref_f32)))
    print("KERNEL_OK")
</pallas_src>

<mosaic_0001>
module attributes {stable_mosaic.version = 11 : i64} {
  func.func @backbone_proj1_kernel(%arg0: i32, %arg1: memref<16x512xf32, #tpu.memory_space<vmem>>, %arg2: memref<512x256xbf16, #tpu.memory_space<vmem>>, %arg3: memref<1x256xf32, #tpu.memory_space<vmem>>, %arg4: memref<256x256xbf16, #tpu.memory_space<vmem>>, %arg5: memref<16x256xbf16, #tpu.memory_space<vmem>>, %arg6: memref<1x1x256xf32, #tpu.memory_space<vmem>>, %arg7: memref<1x1x256xf32, #tpu.memory_space<vmem>>) attributes {dimension_semantics = [#tpu.dimension_semantics<parallel>], iteration_bounds = array<i64: 4>, scalar_prefetch = 0 : i64, scratch_operands = 0 : i64, tpu.core_type = #tpu.core_type<tc>, window_params = [{transform_indices = @transform_0, window_bounds = array<i64: 16, 512>}, {pipeline_mode = #tpu.pipeline_mode<synchronous>, transform_indices = @transform_1, window_bounds = array<i64: 512, 256>}, {pipeline_mode = #tpu.pipeline_mode<synchronous>, transform_indices = @transform_2, window_bounds = array<i64: 1, 256>}, {pipeline_mode = #tpu.pipeline_mode<synchronous>, transform_indices = @transform_3, window_bounds = array<i64: 256, 256>}, {transform_indices = @transform_4, window_bounds = array<i64: 16, 256>}, {transform_indices = @transform_5, window_bounds = array<i64: 1, 1, 256>}, {transform_indices = @transform_6, window_bounds = array<i64: 1, 1, 256>}]} {
    %c0 = arith.constant 0 : index
    %c0_0 = arith.constant 0 : index
    %0 = vector.load %arg1[%c0, %c0_0] : memref<16x512xf32, #tpu.memory_space<vmem>>, vector<16x512xf32>
    %1 = arith.truncf %0 : vector<16x512xf32> to vector<16x512xbf16>
    %c0_1 = arith.constant 0 : index
    %c0_2 = arith.constant 0 : index
    %2 = vector.load %arg2[%c0_1, %c0_2] : memref<512x256xbf16, #tpu.memory_space<vmem>>, vector<512x256xbf16>
    %cst = arith.constant dense<0.000000e+00> : vector<16x256xf32>
    %3 = tpu.matmul %1, %2, %cst {dimension_numbers = #tpu.dot_dimension_numbers<[1], [0], [0], [1], [0, 0, 1, 1], [], []>} : vector<16x512xbf16>, vector<512x256xbf16>, vector<16x256xf32> -> vector<16x256xf32>
    %c0_3 = arith.constant 0 : index
    %c0_4 = arith.constant 0 : index
    %4 = vector.load %arg3[%c0_3, %c0_4] : memref<1x256xf32, #tpu.memory_space<vmem>>, vector<1x256xf32>
    %5 = vector.broadcast %4 : vector<1x256xf32> to vector<16x256xf32>
    %6 = arith.addf %3, %5 : vector<16x256xf32>
    %cst_5 = arith.constant 0.000000e+00 : f32
    %7 = vector.broadcast %cst_5 : f32 to vector<16x256xf32>
    %8 = arith.maximumf %6, %7 : vector<16x256xf32>
    %9 = arith.truncf %8 : vector<16x256xf32> to vector<16x256xbf16>
    %c0_6 = arith.constant 0 : index
    %c0_7 = arith.constant 0 : index
    %10 = vector.load %arg4[%c0_6, %c0_7] : memref<256x256xbf16, #tpu.memory_space<vmem>>, vector<256x256xbf16>
    %cst_8 = arith.constant dense<0.000000e+00> : vector<16x256xf32>
    %11 = tpu.matmul %9, %10, %cst_8 {dimension_numbers = #tpu.dot_dimension_numbers<[1], [0], [0], [1], [0, 0, 1, 1], [], []>} : vector<16x256xbf16>, vector<256x256xbf16>, vector<16x256xf32> -> vector<16x256xf32>
    %cst_9 = arith.constant dense<0.000000e+00> : vector<256xf32>
    %12 = vector.multi_reduction <add>, %11, %cst_9 [0] : vector<16x256xf32> to vector<256xf32>
    %13 = vector.shape_cast %12 : vector<256xf32> to vector<1x256xf32>
    %c0_10 = arith.constant 0 : index
    %c0_11 = arith.constant 0 : index
    %c0_12 = arith.constant 0 : index
    %14 = vector.load %arg6[%c0_10, %c0_11, %c0_12] : memref<1x1x256xf32, #tpu.memory_space<vmem>>, vector<1x1x256xf32>
    %15 = vector.shape_cast %14 : vector<1x1x256xf32> to vector<1x256xf32>
    %16 = vector.shape_cast %13 : vector<1x256xf32> to vector<1x1x256xf32>
    tpu.vector_store %arg6[%c0_10, %c0_11, %c0_12], %16 {strides = array<i32>} : memref<1x1x256xf32, #tpu.memory_space<vmem>>, vector<1x1x256xf32>,
    %17 = arith.mulf %11, %11 : vector<16x256xf32>
    %cst_13 = arith.constant dense<0.000000e+00> : vector<256xf32>
    %18 = vector.multi_reduction <add>, %17, %cst_13 [0] : vector<16x256xf32> to vector<256xf32>
    %19 = vector.shape_cast %18 : vector<256xf32> to vector<1x256xf32>
    %c0_14 = arith.constant 0 : index
    %c0_15 = arith.constant 0 : index
    %c0_16 = arith.constant 0 : index
    %20 = vector.load %arg7[%c0_14, %c0_15, %c0_16] : memref<1x1x256xf32, #tpu.memory_space<vmem>>, vector<1x1x256xf32>
    %21 = vector.shape_cast %20 : vector<1x1x256xf32> to vector<1x256xf32>
    %22 = vector.shape_cast %19 : vector<1x256xf32> to vector<1x1x256xf32>
    tpu.vector_store %arg7[%c0_14, %c0_15, %c0_16], %22 {strides = array<i32>} : memref<1x1x256xf32, #tpu.memory_space<vmem>>, vector<1x1x256xf32>,
    %23 = arith.truncf %11 : vector<16x256xf32> to vector<16x256xbf16>
    %c0_17 = arith.constant 0 : index
    %c0_18 = arith.constant 0 : index
    %24 = vector.load %arg5[%c0_17, %c0_18] : memref<16x256xbf16, #tpu.memory_space<vmem>>, vector<16x256xbf16>
    tpu.vector_store %arg5[%c0_17, %c0_18], %23 {strides = array<i32>} : memref<16x256xbf16, #tpu.memory_space<vmem>>, vector<16x256xbf16>,
    return
  }
  func.func @transform_0(%arg0: i32) -> (i32, i32) {
    %c0_i32 = arith.constant 0 : i32
    %c0_i32_0 = arith.constant 0 : i32
    return %arg0, %c0_i32 : i32, i32
  }
  func.func @transform_1(%arg0: i32) -> (i32, i32) {
    %c0_i32 = arith.constant 0 : i32
    %c0_i32_0 = arith.constant 0 : i32
    %c0_i32_1 = arith.constant 0 : i32
    return %c0_i32, %c0_i32_0 : i32, i32
  }
  func.func @transform_2(%arg0: i32) -> (i32, i32) {
    %c0_i32 = arith.constant 0 : i32
    %c0_i32_0 = arith.constant 0 : i32
    %c0_i32_1 = arith.constant 0 : i32
    return %c0_i32, %c0_i32_0 : i32, i32
  }
  func.func @transform_3(%arg0: i32) -> (i32, i32) {
    %c0_i32 = arith.constant 0 : i32
    %c0_i32_0 = arith.constant 0 : i32
    %c0_i32_1 = arith.constant 0 : i32
    return %c0_i32, %c0_i32_0 : i32, i32
  }
  func.func @transform_4(%arg0: i32) -> (i32, i32) {
    %c0_i32 = arith.constant 0 : i32
    %c0_i32_0 = arith.constant 0 : i32
    return %arg0, %c0_i32 : i32, i32
  }
  func.func @transform_5(%arg0: i32) -> (i32, i32, i32) {
    %c0_i32 = arith.constant 0 : i32
    %c0_i32_0 = arith.constant 0 : i32
    %c0_i32_1 = arith.constant 0 : i32
    return %arg0, %c0_i32, %c0_i32_0 : i32, i32, i32
  }
  func.func @transform_6(%arg0: i32) -> (i32, i32, i32) {
    %c0_i32 = arith.constant 0 : i32
    %c0_i32_0 = arith.constant 0 : i32
    %c0_i32_1 = arith.constant 0 : i32
    return %arg0, %c0_i32, %c0_i32_0 : i32, i32, i32
  }
}

</mosaic_0001>

<llo_original>
// kernel: tpu_custom_call.1
$region0: #{tpu_custom_call.1}
  #allocation0 [shape = 'u32[]', space=smem, size = 0x4, offset = 0x4, fixed_abs, tag = 'smem constant byte address 0x4 - core index']
  #allocation1 [shape = 'u32[144,128]{1,0:T(1,128)}', space=vmem, size = 0x12000, scoped, tag = 'internal scratch']
  %s0 = inlined_call_operand.hbm [shape: f32[64,512], index: 0, kind: input, shape index: {}]
  %s1 = inlined_call_operand.hbm [shape: bf16[512,256], index: 1, kind: input, shape index: {}]
  %s2 = inlined_call_operand.vmem [shape: f32[1,256], index: 2, kind: input, shape index: {}]
  %s3 = inlined_call_operand.hbm [shape: bf16[256,256], index: 3, kind: input, shape index: {}]
  %s4 = inlined_call_operand.hbm [shape: bf16[64,256], index: 4, kind: output, shape index: {0}]
  %s5 = inlined_call_operand.hbm [shape: f32[4,1,256], index: 5, kind: output, shape index: {1}]
  %s6 = inlined_call_operand.hbm [shape: f32[4,1,256], index: 6, kind: output, shape index: {2}]
  %7 = xla_tuple %s4, %s5, %s6
  %s8 = sld [smem:[#allocation0]]
  $region77: #{tpu_custom_call.1} parent=0
    _
  %s10 = ssub.s32 1, %s8
  %s11 = scalar_select 0, %s10, %s8
  $region1: #{tpu_custom_call.1} parent=0
    #allocation2 [shape = 'u8[65536]{0}', space=vmem, size = 0x10000, scoped, tag = 'input window, operand 0']
    #allocation3 [shape = 's32[2]{0}', space=sflag, size = 0x8, scoped, tag = 'scoped memory for tpu_custom_call.1']
    #allocation4 [shape = 's32[2]{0}', space=sflag, size = 0x8, scoped, tag = 'scoped memory for tpu_custom_call.1']
    #allocation5 [shape = 'u8[262144]{0}', space=vmem, size = 0x40000, scoped, tag = 'input window, operand 1, single buffered']
    #allocation6 [shape = 's32[1]{0}', space=sflag, size = 0x4, scoped, tag = 'scoped memory for tpu_custom_call.1']
    #allocation7 [shape = 'u8[131072]{0}', space=vmem, size = 0x20000, scoped, tag = 'input window, operand 3, single buffered']
    #allocation8 [shape = 'u8[16384]{0}', space=vmem, size = 0x4000, scoped, tag = 'output window, operand 0']
    #allocation9 [shape = 'u8[2048]{0}', space=vmem, size = 0x800, scoped, tag = 'output window, operand 1']
    #allocation10 [shape = 's32[2]{0}', space=sflag, size = 0x8, scoped, tag = 'scoped memory for tpu_custom_call.1']
    #allocation11 [shape = 'u8[2048]{0}', space=vmem, size = 0x800, scoped, tag = 'output window, operand 2']
    %12 = vsyncpa [#allocation3], 0
    %s13 = scalar_lea.sflag [#allocation3], 1
    %14 = vsyncpa %s13, 0
    %15 = vsyncpa [#allocation6], 0
    %16 = vsyncpa [#allocation4], 0
    %s17 = scalar_lea.sflag [#allocation4], 1
    %18 = vsyncpa %s17, 0
    %19 = vsyncpa [#allocation10], 0
    %s20 = scalar_lea.sflag [#allocation10], 1
    %21 = vsyncpa %s20, 0
    loop: start=0, step=1, limit=6
    $region2: #{tpu_custom_call.1} parent=1 // loop_pre_header
      _
    $region3: #{tpu_custom_call.1} parent=1 // loop_header
      %s23 = sphi 0, %s27
      %p24 = scmp.ge.s32.totalorder %s23, 6
      %s33 = sphi 0, %s35
      %s36 = sphi 0, %s33
      %s37 = sphi 0, %s36
      %s53 = sphi 0, %s37
      %s57 = sphi 0, %s57
      %s59 = sphi 0, %s57
      %s60 = sphi 0, %s59
      %s74 = sphi 0, %s60
      %s78 = sphi 0, %s78
      %s80 = sphi 0, %s78
      %s81 = sphi 0, %s80
      %s95 = sphi 0, %s81
      %s99 = sphi 0, %s99
      %s101 = sphi 0, %s99
      %s102 = sphi 0, %s101
      %s116 = sphi 0, %s102
      %s122 = sphi 0, %s124
      %s125 = sphi 0, %s122
      %s126 = sphi 0, %s125
      %s142 = sphi 0, %s126
      %s148 = sphi 0, %s150
      %s151 = sphi 0, %s148
      %s152 = sphi 0, %s151
      %s168 = sphi 0, %s152
      %s174 = sphi 0, %s176
      %s177 = sphi 0, %s174
      %s178 = sphi 0, %s177
      %s194 = sphi 0, %s178
    $region4: #{tpu_custom_call.1} parent=1 // loop_header_branch
      %26 = sbr.rel (%p24) target = $region8
    $region5: #{tpu_custom_call.1} parent=1 // loop_body
      %s28 = ssub.s32 %s23, 1
      %s29 = ssub.s32 %s23, 2
      %s30 = sadd.s32 %s23, 1
      %s31 = ssub.s32 %s23, %s30
      %p32 = scmp.eq.s32.totalorder %s31, 0
      %s34 = sadd.s32 %s33, 1
      %s35 = scalar_select %p32, %s33, %s34
      %p38 = pneg %p32
      %p39 = scmp.eq.s32.totalorder %s23, 3
      %p40 = por %p38, %p39
      %p41 = scmp.ne.s32.totalorder %s33, %s36
      %p42 = scmp.eq.s32.totalorder %s23, 0
      %p43 = por %p41, %p42
      %p44 = scmp.ne.s32.totalorder %s33, %s36
      %p45 = scmp.eq.s32.totalorder %s28, 3
      %p46 = por %p44, %p45
      %p47 = scmp.ne.s32.totalorder %s36, %s37
      %p48 = scmp.eq.s32.totalorder %s28, 0
      %p49 = por %p47, %p48
      %p50 = scmp.ne.s32.totalorder %s36, %s37
      %p51 = scmp.eq.s32.totalorder %s29, 3
      %p52 = por %p50, %p51
      %p54 = scmp.ne.s32.totalorder %s37, %s53
      %p55 = scmp.eq.s32.totalorder %s29, 0
      %p56 = por %p54, %p55
      %s58 = sadd.s32 %s57, 1
      %p61 = scmp.eq.s32.totalorder %s23, 3
      %p62 = scmp.ne.s32.totalorder %s57, %s59
      %p63 = scmp.eq.s32.totalorder %s23, 0
      %p64 = por %p62, %p63
      %p65 = scmp.ne.s32.totalorder %s57, %s59
      %p66 = scmp.eq.s32.totalorder %s28, 3
      %p67 = por %p65, %p66
      %p68 = scmp.ne.s32.totalorder %s59, %s60
      %p69 = scmp.eq.s32.totalorder %s28, 0
      %p70 = por %p68, %p69
      %p71 = scmp.ne.s32.totalorder %s59, %s60
      %p72 = scmp.eq.s32.totalorder %s29, 3
      %p73 = por %p71, %p72
      %p75 = scmp.ne.s32.totalorder %s60, %s74
      %p76 = scmp.eq.s32.totalorder %s29, 0
      %p77 = por %p75, %p76
      %s79 = sadd.s32 %s78, 1
      %p82 = scmp.eq.s32.totalorder %s23, 3
      %p83 = scmp.ne.s32.totalorder %s78, %s80
      %p84 = scmp.eq.s32.totalorder %s23, 0
      %p85 = por %p83, %p84
      %p86 = scmp.ne.s32.totalorder %s78, %s80
      %p87 = scmp.eq.s32.totalorder %s28, 3
      %p88 = por %p86, %p87
      %p89 = scmp.ne.s32.totalorder %s80, %s81
      %p90 = scmp.eq.s32.totalorder %s28, 0
      %p91 = por %p89, %p90
      %p92 = scmp.ne.s32.totalorder %s80, %s81
      %p93 = scmp.eq.s32.totalorder %s29, 3
      %p94 = por %p92, %p93
      %p96 = scmp.ne.s32.totalorder %s81, %s95
      %p97 = scmp.eq.s32.totalorder %s29, 0
      %p98 = por %p96, %p97
      %s100 = sadd.s32 %s99, 1
      %p103 = scmp.eq.s32.totalorder %s23, 3
      %p104 = scmp.ne.s32.totalorder %s99, %s101
      %p105 = scmp.eq.s32.totalorder %s23, 0
      %p106 = por %p104, %p105
      %p107 = scmp.ne.s32.totalorder %s99, %s101
      %p108 = scmp.eq.s32.totalorder %s28, 3
      %p109 = por %p107, %p108
      %p110 = scmp.ne.s32.totalorder %s101, %s102
      %p111 = scmp.eq.s32.totalorder %s28, 0
      %p112 = por %p110, %p111
      %p113 = scmp.ne.s32.totalorder %s101, %s102
      %p114 = scmp.eq.s32.totalorder %s29, 3
      %p115 = por %p113, %p114
      %p117 = scmp.ne.s32.totalorder %s102, %s116
      %p118 = scmp.eq.s32.totalorder %s29, 0
      %p119 = por %p117, %p118
      %s120 = ssub.s32 %s23, %s30
      %p121 = scmp.eq.s32.totalorder %s120, 0
      %s123 = sadd.s32 %s122, 1
      %s124 = scalar_select %p121, %s122, %s123
      %p127 = pneg %p121
      %p128 = scmp.eq.s32.totalorder %s23, 3
      %p129 = por %p127, %p128
      %p130 = scmp.ne.s32.totalorder %s122, %s125
      %p131 = scmp.eq.s32.totalorder %s23, 0
      %p132 = por %p130, %p131
      %p133 = scmp.ne.s32.totalorder %s122, %s125
      %p134 = scmp.eq.s32.totalorder %s28, 3
      %p135 = por %p133, %p134
      %p136 = scmp.ne.s32.totalorder %s125, %s126
      %p137 = scmp.eq.s32.totalorder %s28, 0
      %p138 = por %p136, %p137
      %p139 = scmp.ne.s32.totalorder %s125, %s126
      %p140 = scmp.eq.s32.totalorder %s29, 3
      %p141 = por %p139, %p140
      %p143 = scmp.ne.s32.totalorder %s126, %s142
      %p144 = scmp.eq.s32.totalorder %s29, 0
      %p145 = por %p143, %p144
      %s146 = ssub.s32 %s23, %s30
      %p147 = scmp.eq.s32.totalorder %s146, 0
      %s149 = sadd.s32 %s148, 1
      %s150 = scalar_select %p147, %s148, %s149
      %p153 = pneg %p147
      %p154 = scmp.eq.s32.totalorder %s23, 3
      %p155 = por %p153, %p154
      %p156 = scmp.ne.s32.totalorder %s148, %s151
      %p157 = scmp.eq.s32.totalorder %s23, 0
      %p158 = por %p156, %p157
      %p159 = scmp.ne.s32.totalorder %s148, %s151
      %p160 = scmp.eq.s32.totalorder %s28, 3
      %p161 = por %p159, %p160
      %p162 = scmp.ne.s32.totalorder %s151, %s152
      %p163 = scmp.eq.s32.totalorder %s28, 0
      %p164 = por %p162, %p163
      %p165 = scmp.ne.s32.totalorder %s151, %s152
      %p166 = scmp.eq.s32.totalorder %s29, 3
      %p167 = por %p165, %p166
      %p169 = scmp.ne.s32.totalorder %s152, %s168
      %p170 = scmp.eq.s32.totalorder %s29, 0
      %p171 = por %p169, %p170
      %s172 = ssub.s32 %s23, %s30
      %p173 = scmp.eq.s32.totalorder %s172, 0
      %s175 = sadd.s32 %s174, 1
      %s176 = scalar_select %p173, %s174, %s175
      %p179 = pneg %p173
      %p180 = scmp.eq.s32.totalorder %s23, 3
      %p181 = por %p179, %p180
      %p182 = scmp.ne.s32.totalorder %s174, %s177
      %p183 = scmp.eq.s32.totalorder %s23, 0
      %p184 = por %p182, %p183
      %p185 = scmp.ne.s32.totalorder %s174, %s177
      %p186 = scmp.eq.s32.totalorder %s28, 3
      %p187 = por %p185, %p186
      %p188 = scmp.ne.s32.totalorder %s177, %s178
      %p189 = scmp.eq.s32.totalorder %s28, 0
      %p190 = por %p188, %p189
      %p191 = scmp.ne.s32.totalorder %s177, %s178
      %p192 = scmp.eq.s32.totalorder %s29, 3
      %p193 = por %p191, %p192
      %p195 = scmp.ne.s32.totalorder %s178, %s194
      %p196 = scmp.eq.s32.totalorder %s29, 0
      %p197 = por %p195, %p196
      %p198 = scmp.le.s32.totalorder 1, %s23
      %p199 = scmp.lt.s32.totalorder %s23, 5
      %p200 = pnand %p198, %p199
      %p201 = pneg %p200
      // Predicated region
      $region9: #{tpu_custom_call.1} parent=5 // pred_check
        _
      $region10: #{tpu_custom_call.1} parent=5 // pred_check_branch
        %203 = sbr.rel (%p200) target = $region12
      $region11: #{tpu_custom_call.1} parent=5 // pred_region
        %s204 = ssub.s32 %s23, 1
        // Predicated region
        $region13: #{tpu_custom_call.1} parent=11 // pred_check
          %p205 = pneg %p70
        $region14: #{tpu_custom_call.1} parent=11 // pred_check_branch
          %207 = sbr.rel (%p205) target = $region16
        $region15: #{tpu_custom_call.1} parent=11 // pred_region
          %s209 = ssub.s32 8192, 8192
          %210 = vsyncadd [#allocation6], %s209
          %s211 = sshll.u32 [#allocation5], 4
          %s212 = int_to_ptr.vmem [resolvable:$true] %s211
          %217 = dma.hbm_to_vmem [thread:$0]  %s1, 8192, %s212, [#allocation6], 128, 128, 8
        $region16: #{tpu_custom_call.1} parent=11 // pred_fallthru
          _
        // Predicated region
        $region17: #{tpu_custom_call.1} parent=11 // pred_check
          %p218 = pneg %p91
        $region18: #{tpu_custom_call.1} parent=11 // pred_check_branch
          %220 = sbr.rel (%p218) target = $region20
        $region19: #{tpu_custom_call.1} parent=11 // pred_region
          _
        $region20: #{tpu_custom_call.1} parent=11 // pred_fallthru
          _
        // Predicated region
        $region21: #{tpu_custom_call.1} parent=11 // pred_check
          %p221 = pneg %p112
        $region22: #{tpu_custom_call.1} parent=11 // pred_check_branch
          %223 = sbr.rel (%p221) target = $region24
        $region23: #{tpu_custom_call.1} parent=11 // pred_region
          %s225 = ssub.s32 4096, 4096
          %226 = vsyncadd [#allocation6], %s225
          %s227 = sshll.u32 [#allocation7], 4
          %s228 = int_to_ptr.vmem [resolvable:$true] %s227
          %233 = dma.hbm_to_vmem [thread:$0]  %s3, 4096, %s228, [#allocation6], 128, 128, 8
        $region24: #{tpu_custom_call.1} parent=11 // pred_fallthru
          _
      $region12: #{tpu_custom_call.1} parent=5 // pred_fallthru
        _
      %p234 = scmp.lt.s32.totalorder %s23, 4
      // Predicated region
      $region25: #{tpu_custom_call.1} parent=5 // pred_check
        %p235 = pneg %p234
      $region26: #{tpu_custom_call.1} parent=5 // pred_check_branch
        %237 = sbr.rel (%p235) target = $region28
      $region27: #{tpu_custom_call.1} parent=5 // pred_region
        // Predicated region
        $region29: #{tpu_custom_call.1} parent=27 // pred_check
          %p238 = pneg %p43
        $region30: #{tpu_custom_call.1} parent=27 // pred_check_branch
          %240 = sbr.rel (%p238) target = $region32
        $region31: #{tpu_custom_call.1} parent=27 // pred_region
          %s241 = sand.u32 %s33, 1
          %s242 = scalar_lea.sflag [#allocation3], %s241
          %s243 = sand.u32 %s33, 1
          %s244 = smul.addr %s243, 64
          %s245 = scalar_lea.vmem [#allocation2], %s244
          %s246 = smul.u32 2, %s23
          %s248 = ssub.s32 1024, 1024
          %249 = vsyncadd %s242, %s248
          %s250 = smul.addr %s246, 4
          %s251 = smul.addr %s250, 128
          %s252 = scalar_lea.hbm %s0, %s251
          %s253 = sshll.u32 %s245, 4
          %s254 = int_to_ptr.vmem [resolvable:$true] %s253
          %259 = dma.hbm_to_vmem [thread:$0]  %s252, 1024, %s254, %s242, 512, 512, 32
        $region32: #{tpu_custom_call.1} parent=27 // pred_fallthru
          _
      $region28: #{tpu_custom_call.1} parent=5 // pred_fallthru
        _
      %p260 = scmp.le.s32.totalorder 1, %s23
      %p261 = scmp.lt.s32.totalorder %s23, 5
      %p262 = pnand %p260, %p261
      %p263 = pneg %p262
      // Predicated region
      $region33: #{tpu_custom_call.1} parent=5 // pred_check
        _
      $region34: #{tpu_custom_call.1} parent=5 // pred_check_branch
        %265 = sbr.rel (%p262) target = $region36
      $region35: #{tpu_custom_call.1} parent=5 // pred_region
        %s266 = ssub.s32 %s23, 1
        %s267 = sand.u32 %s36, 1
        %s268 = scalar_lea.sflag [#allocation3], %s267
        %s269 = sand.u32 %s36, 1
        %s270 = smul.addr %s269, 64
        %s271 = scalar_lea.vmem [#allocation2], %s270
        // Predicated region
        $region37: #{tpu_custom_call.1} parent=35 // pred_check
          %p272 = pneg %p49
        $region38: #{tpu_custom_call.1} parent=35 // pred_check_branch
          %274 = sbr.rel (%p272) target = $region40
        $region39: #{tpu_custom_call.1} parent=35 // pred_region
          %275 = dma.done %s268, 1024
        $region40: #{tpu_custom_call.1} parent=35 // pred_fallthru
          _
        // Predicated region
        $region41: #{tpu_custom_call.1} parent=35 // pred_check
          %p276 = pneg %p70
        $region42: #{tpu_custom_call.1} parent=35 // pred_check_branch
          %278 = sbr.rel (%p276) target = $region44
        $region43: #{tpu_custom_call.1} parent=35 // pred_region
          %279 = dma.done [#allocation6], 8192
        $region44: #{tpu_custom_call.1} parent=35 // pred_fallthru
          _
        // Predicated region
        $region45: #{tpu_custom_call.1} parent=35 // pred_check
          %p280 = pneg %p112
        $region46: #{tpu_custom_call.1} parent=35 // pred_check_branch
          %282 = sbr.rel (%p280) target = $region48
        $region47: #{tpu_custom_call.1} parent=35 // pred_region
          %283 = dma.done [#allocation6], 4096
        $region48: #{tpu_custom_call.1} parent=35 // pred_fallthru
          _
        %s284 = sand.u32 %s36, 1
        %s285 = scalar_lea.sflag [#allocation3], %s284
        %s286 = sand.u32 %s36, 1
        %s287 = smul.addr %s286, 64
        %s288 = scalar_lea.vmem [#allocation2], %s287
        %p289 = pneg %p49
        %p290 = pneg %p46
        %p291 = pneg %p70
        %p292 = pneg %p67
        %p293 = pneg %p91
        %p294 = pneg %p88
        %p295 = pneg %p112
        %p296 = pneg %p109
        %p297 = pneg %p138
        %p298 = pneg %p135
        %s299 = sand.u32 %s125, 1
        %s300 = scalar_lea.sflag [#allocation4], %s299
        %s301 = sand.u32 %s125, 1
        %s302 = smul.addr %s301, 16
        %s303 = scalar_lea.vmem [#allocation8], %s302
        %p304 = pneg %p164
        %p305 = pneg %p161
        %s306 = sand.u32 %s28, 1
        %s307 = scalar_lea.sflag [#allocation10], %s306
        %s308 = sand.u32 %s151, 1
        %s309 = smul.addr %s308, 2
        %s310 = scalar_lea.vmem [#allocation9], %s309
        %p311 = pneg %p190
        %p312 = pneg %p187
        %s313 = sand.u32 %s28, 1
        %s314 = scalar_lea.sflag [#allocation10], %s313
        %s315 = sand.u32 %s177, 1
        %s316 = smul.addr %s315, 2
        %s317 = scalar_lea.vmem [#allocation11], %s316
        %s318 = smul.u32 2, %s28
        %s319 = smul.u32 2, %s28
        %v320 = vld [vmem:[%s271] sm:$0xff]
        %v321 = vld [vmem:[%s271 + $0x8] sm:$0xff]
        %v322 = vld [vmem:[%s271 + $0x10] sm:$0xff]
        %v323 = vld [vmem:[%s271 + $0x18] sm:$0xff]
        %v324 = vld [vmem:[%s271 + $0x20] sm:$0xff]
        %v325 = vld [vmem:[%s271 + $0x28] sm:$0xff]
        %v326 = vld [vmem:[%s271 + $0x30] sm:$0xff]
        %v327 = vld [vmem:[%s271 + $0x38] sm:$0xff]
        %v328 = vpack.c.bf16 %v324, %v320
        %v329 = vpack.c.bf16 %v325, %v321
        %v330 = vpack.c.bf16 %v326, %v322
        %v331 = vpack.c.bf16 %v327, %v323
        %v332 = vld [vmem:[#allocation5] sm:$0xff]
        %v333 = vld [vmem:[#allocation5 + $0x8] sm:$0xff]
        %v334 = vld [vmem:[#allocation5 + $0x10] sm:$0xff]
        %v335 = vld [vmem:[#allocation5 + $0x18] sm:$0xff]
        %v336 = vld [vmem:[#allocation5 + $0x20] sm:$0xff]
        %v337 = vld [vmem:[#allocation5 + $0x28] sm:$0xff]
        %v338 = vld [vmem:[#allocation5 + $0x30] sm:$0xff]
        %v339 = vld [vmem:[#allocation5 + $0x38] sm:$0xff]
        %v340 = vld [vmem:[#allocation5 + $0x40] sm:$0xff]
        %v341 = vld [vmem:[#allocation5 + $0x48] sm:$0xff]
        %v342 = vld [vmem:[#allocation5 + $0x50] sm:$0xff]
        %v343 = vld [vmem:[#allocation5 + $0x58] sm:$0xff]
        %v344 = vld [vmem:[#allocation5 + $0x60] sm:$0xff]
        %v345 = vld [vmem:[#allocation5 + $0x68] sm:$0xff]
        %v346 = vld [vmem:[#allocation5 + $0x70] sm:$0xff]
        %v347 = vld [vmem:[#allocation5 + $0x78] sm:$0xff]
        %v348 = vld [vmem:[#allocation5 + $0x80] sm:$0xff]
        %v349 = vld [vmem:[#allocation5 + $0x88] sm:$0xff]
        %v350 = vld [vmem:[#allocation5 + $0x90] sm:$0xff]
        %v351 = vld [vmem:[#allocation5 + $0x98] sm:$0xff]
        %v352 = vld [vmem:[#allocation5 + $0xa0] sm:$0xff]
        %v353 = vld [vmem:[#allocation5 + $0xa8] sm:$0xff]
        %v354 = vld [vmem:[#allocation5 + $0xb0] sm:$0xff]
        %v355 = vld [vmem:[#allocation5 + $0xb8] sm:$0xff]
        %v356 = vld [vmem:[#allocation5 + $0xc0] sm:$0xff]
        %v357 = vld [vmem:[#allocation5 + $0xc8] sm:$0xff]
        %v358 = vld [vmem:[#allocation5 + $0xd0] sm:$0xff]
        %v359 = vld [vmem:[#allocation5 + $0xd8] sm:$0xff]
        %v360 = vld [vmem:[#allocation5 + $0xe0] sm:$0xff]
        %v361 = vld [vmem:[#allocation5 + $0xe8] sm:$0xff]
        %v362 = vld [vmem:[#allocation5 + $0xf0] sm:$0xff]
        %v363 = vld [vmem:[#allocation5 + $0xf8] sm:$0xff]
        %v364 = vld [vmem:[#allocation5 + $0x100] sm:$0xff]
        %v365 = vld [vmem:[#allocation5 + $0x108] sm:$0xff]
        %v366 = vld [vmem:[#allocation5 + $0x110] sm:$0xff]
        %v367 = vld [vmem:[#allocation5 + $0x118] sm:$0xff]
        %v368 = vld [vmem:[#allocation5 + $0x120] sm:$0xff]
        %v369 = vld [vmem:[#allocation5 + $0x128] sm:$0xff]
        %v370 = vld [vmem:[#allocation5 + $0x130] sm:$0xff]
        %v371 = vld [vmem:[#allocation5 + $0x138] sm:$0xff]
        %v372 = vld [vmem:[#allocation5 + $0x140] sm:$0xff]
        %v373 = vld [vmem:[#allocation5 + $0x148] sm:$0xff]
        %v374 = vld [vmem:[#allocation5 + $0x150] sm:$0xff]
        %v375 = vld [vmem:[#allocation5 + $0x158] sm:$0xff]
        %v376 = vld [vmem:[#allocation5 + $0x160] sm:$0xff]
        %v377 = vld [vmem:[#allocation5 + $0x168] sm:$0xff]
        %v378 = vld [vmem:[#allocation5 + $0x170] sm:$0xff]
        %v379 = vld [vmem:[#allocation5 + $0x178] sm:$0xff]
        %v380 = vld [vmem:[#allocation5 + $0x180] sm:$0xff]
        %v381 = vld [vmem:[#allocation5 + $0x188] sm:$0xff]
        %v382 = vld [vmem:[#allocation5 + $0x190] sm:$0xff]
        %v383 = vld [vmem:[#allocation5 + $0x198] sm:$0xff]
        %v384 = vld [vmem:[#allocation5 + $0x1a0] sm:$0xff]
        %v385 = vld [vmem:[#allocation5 + $0x1a8] sm:$0xff]
        %v386 = vld [vmem:[#allocation5 + $0x1b0] sm:$0xff]
        %v387 = vld [vmem:[#allocation5 + $0x1b8] sm:$0xff]
        %v388 = vld [vmem:[#allocation5 + $0x1c0] sm:$0xff]
        %v389 = vld [vmem:[#allocation5 + $0x1c8] sm:$0xff]
        %v390 = vld [vmem:[#allocation5 + $0x1d0] sm:$0xff]
        %v391 = vld [vmem:[#allocation5 + $0x1d8] sm:$0xff]
        %v392 = vld [vmem:[#allocation5 + $0x1e0] sm:$0xff]
        %v393 = vld [vmem:[#allocation5 + $0x1e8] sm:$0xff]
        %v394 = vld [vmem:[#allocation5 + $0x1f0] sm:$0xff]
        %v395 = vld [vmem:[#allocation5 + $0x1f8] sm:$0xff]
        %v396 = vld [vmem:[%s2] sm:$0x3]
        %v398 = vlaneseq
        %v399 = vshrl.u32 %v398, 7
        %v400 = vsub.s32 0, %v399
        %v401 = vrot.slane %v396, %v400
        %v402 = vlaneseq
        %v403 = vshrl.u32 %v402, 7
        %v404 = vsub.s32 1, %v403
        %v405 = vrot.slane %v396, %v404
        %v472 = vunpack.c.l.b16 %v332
        %v473 = vunpack.c.h.b16 %v332
        %v474 = vunpack.c.l.b16 %v333
        %v475 = vunpack.c.h.b16 %v333
        %v476 = vunpack.c.l.b16 %v334
        %v477 = vunpack.c.h.b16 %v334
        %v478 = vunpack.c.l.b16 %v335
        %v479 = vunpack.c.h.b16 %v335
        %v480 = vunpack.c.l.b16 %v336
        %v481 = vunpack.c.h.b16 %v336
        %v482 = vunpack.c.l.b16 %v337
        %v483 = vunpack.c.h.b16 %v337
        %v484 = vunpack.c.l.b16 %v338
        %v485 = vunpack.c.h.b16 %v338
        %v486 = vunpack.c.l.b16 %v339
        %v487 = vunpack.c.h.b16 %v339
        %v488 = vunpack.c.l.b16 %v340
        %v489 = vunpack.c.h.b16 %v340
        %v490 = vunpack.c.l.b16 %v341
        %v491 = vunpack.c.h.b16 %v341
        %v492 = vunpack.c.l.b16 %v342
        %v493 = vunpack.c.h.b16 %v342
        %v494 = vunpack.c.l.b16 %v343
        %v495 = vunpack.c.h.b16 %v343
        %v496 = vunpack.c.l.b16 %v344
        %v497 = vunpack.c.h.b16 %v344
        %v498 = vunpack.c.l.b16 %v345
        %v499 = vunpack.c.h.b16 %v345
        %v500 = vunpack.c.l.b16 %v346
        %v501 = vunpack.c.h.b16 %v346
        %v502 = vunpack.c.l.b16 %v347
        %v503 = vunpack.c.h.b16 %v347
        %v504 = vunpack.c.l.b16 %v348
        %v505 = vunpack.c.h.b16 %v348
        %v506 = vunpack.c.l.b16 %v349
        %v507 = vunpack.c.h.b16 %v349
        %v508 = vunpack.c.l.b16 %v350
        %v509 = vunpack.c.h.b16 %v350
        %v510 = vunpack.c.l.b16 %v351
        %v511 = vunpack.c.h.b16 %v351
        %v512 = vunpack.c.l.b16 %v352
        %v513 = vunpack.c.h.b16 %v352
        %v514 = vunpack.c.l.b16 %v353
        %v515 = vunpack.c.h.b16 %v353
        %v516 = vunpack.c.l.b16 %v354
        %v517 = vunpack.c.h.b16 %v354
        %v518 = vunpack.c.l.b16 %v355
        %v519 = vunpack.c.h.b16 %v355
        %v520 = vunpack.c.l.b16 %v356
        %v521 = vunpack.c.h.b16 %v356
        %v522 = vunpack.c.l.b16 %v357
        %v523 = vunpack.c.h.b16 %v357
        %v524 = vunpack.c.l.b16 %v358
        %v525 = vunpack.c.h.b16 %v358
        %v526 = vunpack.c.l.b16 %v359
        %v527 = vunpack.c.h.b16 %v359
        %v528 = vunpack.c.l.b16 %v360
        %v529 = vunpack.c.h.b16 %v360
        %v530 = vunpack.c.l.b16 %v361
        %v531 = vunpack.c.h.b16 %v361
        %v532 = vunpack.c.l.b16 %v362
        %v533 = vunpack.c.h.b16 %v362
        %v534 = vunpack.c.l.b16 %v363
        %v535 = vunpack.c.h.b16 %v363
        %v536 = vunpack.c.l.b16 %v364
        %v537 = vunpack.c.h.b16 %v364
        %v538 = vunpack.c.l.b16 %v365
        %v539 = vunpack.c.h.b16 %v365
        %v540 = vunpack.c.l.b16 %v366
        %v541 = vunpack.c.h.b16 %v366
        %v542 = vunpack.c.l.b16 %v367
        %v543 = vunpack.c.h.b16 %v367
        %v544 = vunpack.c.l.b16 %v368
        %v545 = vunpack.c.h.b16 %v368
        %v546 = vunpack.c.l.b16 %v369
        %v547 = vunpack.c.h.b16 %v369
        %v548 = vunpack.c.l.b16 %v370
        %v549 = vunpack.c.h.b16 %v370
        %v550 = vunpack.c.l.b16 %v371
        %v551 = vunpack.c.h.b16 %v371
        %v552 = vunpack.c.l.b16 %v372
        %v553 = vunpack.c.h.b16 %v372
        %v554 = vunpack.c.l.b16 %v373
        %v555 = vunpack.c.h.b16 %v373
        %v556 = vunpack.c.l.b16 %v374
        %v557 = vunpack.c.h.b16 %v374
        %v558 = vunpack.c.l.b16 %v375
        %v559 = vunpack.c.h.b16 %v375
        %v560 = vunpack.c.l.b16 %v376
        %v561 = vunpack.c.h.b16 %v376
        %v562 = vunpack.c.l.b16 %v377
        %v563 = vunpack.c.h.b16 %v377
        %v564 = vunpack.c.l.b16 %v378
        %v565 = vunpack.c.h.b16 %v378
        %v566 = vunpack.c.l.b16 %v379
        %v567 = vunpack.c.h.b16 %v379
        %v568 = vunpack.c.l.b16 %v380
        %v569 = vunpack.c.h.b16 %v380
        %v570 = vunpack.c.l.b16 %v381
        %v571 = vunpack.c.h.b16 %v381
        %v572 = vunpack.c.l.b16 %v382
        %v573 = vunpack.c.h.b16 %v382
        %v574 = vunpack.c.l.b16 %v383
        %v575 = vunpack.c.h.b16 %v383
        %v576 = vunpack.c.l.b16 %v384
        %v577 = vunpack.c.h.b16 %v384
        %v578 = vunpack.c.l.b16 %v385
        %v579 = vunpack.c.h.b16 %v385
        %v580 = vunpack.c.l.b16 %v386
        %v581 = vunpack.c.h.b16 %v386
        %v582 = vunpack.c.l.b16 %v387
        %v583 = vunpack.c.h.b16 %v387
        %v584 = vunpack.c.l.b16 %v388
        %v585 = vunpack.c.h.b16 %v388
        %v586 = vunpack.c.l.b16 %v389
        %v587 = vunpack.c.h.b16 %v389
        %v588 = vunpack.c.l.b16 %v390
        %v589 = vunpack.c.h.b16 %v390
        %v590 = vunpack.c.l.b16 %v391
        %v591 = vunpack.c.h.b16 %v391
        %v592 = vunpack.c.l.b16 %v392
        %v593 = vunpack.c.h.b16 %v392
        %v594 = vunpack.c.l.b16 %v393
        %v595 = vunpack.c.h.b16 %v393
        %v596 = vunpack.c.l.b16 %v394
        %v597 = vunpack.c.h.b16 %v394
        %v598 = vunpack.c.l.b16 %v395
        %v599 = vunpack.c.h.b16 %v395
        %v600 = vpack.c.b16 %v474, %v472
        %v601 = vpack.c.b16 %v475, %v473
        %v602 = vpack.c.b16 %v478, %v476
        %v603 = vpack.c.b16 %v479, %v477
        %v604 = vpack.c.b16 %v482, %v480
        %v605 = vpack.c.b16 %v483, %v481
        %v606 = vpack.c.b16 %v486, %v484
        %v607 = vpack.c.b16 %v487, %v485
        %v608 = vpack.c.b16 %v490, %v488
        %v609 = vpack.c.b16 %v491, %v489
        %v610 = vpack.c.b16 %v494, %v492
        %v611 = vpack.c.b16 %v495, %v493
        %v612 = vpack.c.b16 %v498, %v496
        %v613 = vpack.c.b16 %v499, %v497
        %v614 = vpack.c.b16 %v502, %v500
        %v615 = vpack.c.b16 %v503, %v501
        %v616 = vpack.c.b16 %v506, %v504
        %v617 = vpack.c.b16 %v507, %v505
        %v618 = vpack.c.b16 %v510, %v508
        %v619 = vpack.c.b16 %v511, %v509
        %v620 = vpack.c.b16 %v514, %v512
        %v621 = vpack.c.b16 %v515, %v513
        %v622 = vpack.c.b16 %v518, %v516
        %v623 = vpack.c.b16 %v519, %v517
        %v624 = vpack.c.b16 %v522, %v520
        %v625 = vpack.c.b16 %v523, %v521
        %v626 = vpack.c.b16 %v526, %v524
        %v627 = vpack.c.b16 %v527, %v525
        %v628 = vpack.c.b16 %v530, %v528
        %v629 = vpack.c.b16 %v531, %v529
        %v630 = vpack.c.b16 %v534, %v532
        %v631 = vpack.c.b16 %v535, %v533
        %v632 = vpack.c.b16 %v538, %v536
        %v633 = vpack.c.b16 %v539, %v537
        %v634 = vpack.c.b16 %v542, %v540
        %v635 = vpack.c.b16 %v543, %v541
        %v636 = vpack.c.b16 %v546, %v544
        %v637 = vpack.c.b16 %v547, %v545
        %v638 = vpack.c.b16 %v550, %v548
        %v639 = vpack.c.b16 %v551, %v549
        %v640 = vpack.c.b16 %v554, %v552
        %v641 = vpack.c.b16 %v555, %v553
        %v642 = vpack.c.b16 %v558, %v556
        %v643 = vpack.c.b16 %v559, %v557
        %v644 = vpack.c.b16 %v562, %v560
        %v645 = vpack.c.b16 %v563, %v561
        %v646 = vpack.c.b16 %v566, %v564
        %v647 = vpack.c.b16 %v567, %v565
        %v648 = vpack.c.b16 %v570, %v568
        %v649 = vpack.c.b16 %v571, %v569
        %v650 = vpack.c.b16 %v574, %v572
        %v651 = vpack.c.b16 %v575, %v573
        %v652 = vpack.c.b16 %v578, %v576
        %v653 = vpack.c.b16 %v579, %v577
        %v654 = vpack.c.b16 %v582, %v580
        %v655 = vpack.c.b16 %v583, %v581
        %v656 = vpack.c.b16 %v586, %v584
        %v657 = vpack.c.b16 %v587, %v585
        %v658 = vpack.c.b16 %v590, %v588
        %v659 = vpack.c.b16 %v591, %v589
        %v660 = vpack.c.b16 %v594, %v592
        %v661 = vpack.c.b16 %v595, %v593
        %v662 = vpack.c.b16 %v598, %v596
        %v663 = vpack.c.b16 %v599, %v597
        %728 = vmatprep.subr.bf16.mxu0 %v615
        %729 = vmatpush1.bf16.msra.mxu0 %v614
        %730 = vmatprep.subr.bf16.mxu0 %v613
        %731 = vmatpush1.bf16.msra.mxu0 %v612
        %732 = vmatprep.subr.bf16.mxu0 %v611
        %733 = vmatpush1.bf16.msra.mxu0 %v610
        %734 = vmatprep.subr.bf16.mxu0 %v609
        %735 = vmatpush1.bf16.msra.mxu0 %v608
        %736 = vmatprep.subr.bf16.mxu0 %v607
        %737 = vmatpush1.bf16.msra.mxu0 %v606
        %738 = vmatprep.subr.bf16.mxu0 %v605
        %739 = vmatpush1.bf16.msra.mxu0 %v604
        %740 = vmatprep.subr.bf16.mxu0 %v603
        %741 = vmatpush1.bf16.msra.mxu0 %v602
        %742 = vmatprep.subr.bf16.mxu0 %v601
        %743 = vmatpush1.bf16.msra.mxu0 %v600
        %744 = vmatprep.subr.bf16.mxu0 %v631
        %745 = vmatpush2.bf16.msra.mxu0 %v630
        %746 = vmatprep.subr.bf16.mxu0 %v629
        %747 = vmatpush2.bf16.msra.mxu0 %v628
        %748 = vmatprep.subr.bf16.mxu0 %v627
        %749 = vmatpush2.bf16.msra.mxu0 %v626
        %750 = vmatprep.subr.bf16.mxu0 %v625
        %751 = vmatpush2.bf16.msra.mxu0 %v624
        %752 = vmatprep.subr.bf16.mxu0 %v623
        %753 = vmatpush2.bf16.msra.mxu0 %v622
        %754 = vmatprep.subr.bf16.mxu0 %v621
        %755 = vmatpush2.bf16.msra.mxu0 %v620
        %756 = vmatprep.subr.bf16.mxu0 %v619
        %757 = vmatpush2.bf16.msra.mxu0 %v618
        %758 = vmatprep.subr.bf16.mxu0 %v617
        %759 = vmatpush2.bf16.msra.mxu0 %v616
        %760 = vmatprep.mubr.bf16.mxu0 %v329
        %761 = vmatmul.mubr.bf16.gmra.mxu0 %v328
        %v762 = vpop.f32.mrf.mxu0
        %v763 = vadd.f32 %v401, %v762
        %v764 = vpop.f32.mrf.mxu0
        %v765 = vadd.f32 %v405, %v764
        %v766 = vpop.f32.mrf.mxu0
        %v767 = vadd.f32 %v401, %v766
        %v768 = vpop.f32.mrf.mxu0
        %v769 = vadd.f32 %v405, %v768
        %770 = vdwg.mxu0
        %771 = vmatprep.subr.bf16.mxu0 %v647
        %772 = vmatpush1.bf16.msra.mxu0 %v646
        %773 = vmatprep.subr.bf16.mxu0 %v645
        %774 = vmatpush1.bf16.msra.mxu0 %v644
        %775 = vmatprep.subr.bf16.mxu0 %v643
        %776 = vmatpush1.bf16.msra.mxu0 %v642
        %777 = vmatprep.subr.bf16.mxu0 %v641
        %778 = vmatpush1.bf16.msra.mxu0 %v640
        %779 = vmatprep.subr.bf16.mxu0 %v639
        %780 = vmatpush1.bf16.msra.mxu0 %v638
        %781 = vmatprep.subr.bf16.mxu0 %v637
        %782 = vmatpush1.bf16.msra.mxu0 %v636
        %783 = vmatprep.subr.bf16.mxu0 %v635
        %784 = vmatpush1.bf16.msra.mxu0 %v634
        %785 = vmatprep.subr.bf16.mxu0 %v633
        %786 = vmatpush1.bf16.msra.mxu0 %v632
        %787 = vmatprep.subr.bf16.mxu0 %v663
        %788 = vmatpush2.bf16.msra.mxu0 %v662
        %789 = vmatprep.subr.bf16.mxu0 %v661
        %790 = vmatpush2.bf16.msra.mxu0 %v660
        %791 = vmatprep.subr.bf16.mxu0 %v659
        %792 = vmatpush2.bf16.msra.mxu0 %v658
        %793 = vmatprep.subr.bf16.mxu0 %v657
        %794 = vmatpush2.bf16.msra.mxu0 %v656
        %795 = vmatprep.subr.bf16.mxu0 %v655
        %796 = vmatpush2.bf16.msra.mxu0 %v654
        %797 = vmatprep.subr.bf16.mxu0 %v653
        %798 = vmatpush2.bf16.msra.mxu0 %v652
        %799 = vmatprep.subr.bf16.mxu0 %v651
        %800 = vmatpush2.bf16.msra.mxu0 %v650
        %801 = vmatprep.subr.bf16.mxu0 %v649
        %802 = vmatpush2.bf16.msra.mxu0 %v648
        %803 = vmatprep.mubr.bf16.mxu0 %v331
        %804 = vmatmul.mubr.bf16.gmra.mxu0 %v330
        %v805 = vpop.f32.mrf.mxu0
        %v806 = vadd.f32 %v763, %v805
        %v807 = vpop.f32.mrf.mxu0
        %v808 = vadd.f32 %v765, %v807
        %v809 = vpop.f32.mrf.mxu0
        %v810 = vadd.f32 %v767, %v809
        %v811 = vpop.f32.mrf.mxu0
        %v812 = vadd.f32 %v769, %v811
        %813 = vdwg.mxu0
        %v814 = vmax.f32 %v806, 0.0
        %v815 = vmax.f32 %v808, 0.0
        %v816 = vmax.f32 %v810, 0.0
        %v817 = vmax.f32 %v812, 0.0
        %v818 = vpack.c.bf16 %v816, %v814
        %v819 = vpack.c.bf16 %v817, %v815
        %v820 = vld [vmem:[#allocation7] sm:$0xff]
        %v821 = vld [vmem:[#allocation7 + $0x8] sm:$0xff]
        %v822 = vld [vmem:[#allocation7 + $0x10] sm:$0xff]
        %v823 = vld [vmem:[#allocation7 + $0x18] sm:$0xff]
        %v824 = vld [vmem:[#allocation7 + $0x20] sm:$0xff]
        %v825 = vld [vmem:[#allocation7 + $0x28] sm:$0xff]
        %v826 = vld [vmem:[#allocation7 + $0x30] sm:$0xff]
        %v827 = vld [vmem:[#allocation7 + $0x38] sm:$0xff]
        %v828 = vld [vmem:[#allocation7 + $0x40] sm:$0xff]
        %v829 = vld [vmem:[#allocation7 + $0x48] sm:$0xff]
        %v830 = vld [vmem:[#allocation7 + $0x50] sm:$0xff]
        %v831 = vld [vmem:[#allocation7 + $0x58] sm:$0xff]
        %v832 = vld [vmem:[#allocation7 + $0x60] sm:$0xff]
        %v833 = vld [vmem:[#allocation7 + $0x68] sm:$0xff]
        %v834 = vld [vmem:[#allocation7 + $0x70] sm:$0xff]
        %v835 = vld [vmem:[#allocation7 + $0x78] sm:$0xff]
        %v836 = vld [vmem:[#allocation7 + $0x80] sm:$0xff]
        %v837 = vld [vmem:[#allocation7 + $0x88] sm:$0xff]
        %v838 = vld [vmem:[#allocation7 + $0x90] sm:$0xff]
        %v839 = vld [vmem:[#allocation7 + $0x98] sm:$0xff]
        %v840 = vld [vmem:[#allocation7 + $0xa0] sm:$0xff]
        %v841 = vld [vmem:[#allocation7 + $0xa8] sm:$0xff]
        %v842 = vld [vmem:[#allocation7 + $0xb0] sm:$0xff]
        %v843 = vld [vmem:[#allocation7 + $0xb8] sm:$0xff]
        %v844 = vld [vmem:[#allocation7 + $0xc0] sm:$0xff]
        %v845 = vld [vmem:[#allocation7 + $0xc8] sm:$0xff]
        %v846 = vld [vmem:[#allocation7 + $0xd0] sm:$0xff]
        %v847 = vld [vmem:[#allocation7 + $0xd8] sm:$0xff]
        %v848 = vld [vmem:[#allocation7 + $0xe0] sm:$0xff]
        %v849 = vld [vmem:[#allocation7 + $0xe8] sm:$0xff]
        %v850 = vld [vmem:[#allocation7 + $0xf0] sm:$0xff]
        %v851 = vld [vmem:[#allocation7 + $0xf8] sm:$0xff]
        %v884 = vunpack.c.l.b16 %v820
        %v885 = vunpack.c.h.b16 %v820
        %v886 = vunpack.c.l.b16 %v821
        %v887 = vunpack.c.h.b16 %v821
        %v888 = vunpack.c.l.b16 %v822
        %v889 = vunpack.c.h.b16 %v822
        %v890 = vunpack.c.l.b16 %v823
        %v891 = vunpack.c.h.b16 %v823
        %v892 = vunpack.c.l.b16 %v824
        %v893 = vunpack.c.h.b16 %v824
        %v894 = vunpack.c.l.b16 %v825
        %v895 = vunpack.c.h.b16 %v825
        %v896 = vunpack.c.l.b16 %v826
        %v897 = vunpack.c.h.b16 %v826
        %v898 = vunpack.c.l.b16 %v827
        %v899 = vunpack.c.h.b16 %v827
        %v900 = vunpack.c.l.b16 %v828
        %v901 = vunpack.c.h.b16 %v828
        %v902 = vunpack.c.l.b16 %v829
        %v903 = vunpack.c.h.b16 %v829
        %v904 = vunpack.c.l.b16 %v830
        %v905 = vunpack.c.h.b16 %v830
        %v906 = vunpack.c.l.b16 %v831
        %v907 = vunpack.c.h.b16 %v831
        %v908 = vunpack.c.l.b16 %v832
        %v909 = vunpack.c.h.b16 %v832
        %v910 = vunpack.c.l.b16 %v833
        %v911 = vunpack.c.h.b16 %v833
        %v912 = vunpack.c.l.b16 %v834
        %v913 = vunpack.c.h.b16 %v834
        %v914 = vunpack.c.l.b16 %v835
        %v915 = vunpack.c.h.b16 %v835
        %v916 = vunpack.c.l.b16 %v836
        %v917 = vunpack.c.h.b16 %v836
        %v918 = vunpack.c.l.b16 %v837
        %v919 = vunpack.c.h.b16 %v837
        %v920 = vunpack.c.l.b16 %v838
        %v921 = vunpack.c.h.b16 %v838
        %v922 = vunpack.c.l.b16 %v839
        %v923 = vunpack.c.h.b16 %v839
        %v924 = vunpack.c.l.b16 %v840
        %v925 = vunpack.c.h.b16 %v840
        %v926 = vunpack.c.l.b16 %v841
        %v927 = vunpack.c.h.b16 %v841
        %v928 = vunpack.c.l.b16 %v842
        %v929 = vunpack.c.h.b16 %v842
        %v930 = vunpack.c.l.b16 %v843
        %v931 = vunpack.c.h.b16 %v843
        %v932 = vunpack.c.l.b16 %v844
        %v933 = vunpack.c.h.b16 %v844
        %v934 = vunpack.c.l.b16 %v845
        %v935 = vunpack.c.h.b16 %v845
        %v936 = vunpack.c.l.b16 %v846
        %v937 = vunpack.c.h.b16 %v846
        %v938 = vunpack.c.l.b16 %v847
        %v939 = vunpack.c.h.b16 %v847
        %v940 = vunpack.c.l.b16 %v848
        %v941 = vunpack.c.h.b16 %v848
        %v942 = vunpack.c.l.b16 %v849
        %v943 = vunpack.c.h.b16 %v849
        %v944 = vunpack.c.l.b16 %v850
        %v945 = vunpack.c.h.b16 %v850
        %v946 = vunpack.c.l.b16 %v851
        %v947 = vunpack.c.h.b16 %v851
        %v948 = vpack.c.b16 %v886, %v884
        %v949 = vpack.c.b16 %v887, %v885
        %v950 = vpack.c.b16 %v890, %v888
        %v951 = vpack.c.b16 %v891, %v889
        %v952 = vpack.c.b16 %v894, %v892
        %v953 = vpack.c.b16 %v895, %v893
        %v954 = vpack.c.b16 %v898, %v896
        %v955 = vpack.c.b16 %v899, %v897
        %v956 = vpack.c.b16 %v902, %v900
        %v957 = vpack.c.b16 %v903, %v901
        %v958 = vpack.c.b16 %v906, %v904
        %v959 = vpack.c.b16 %v907, %v905
        %v960 = vpack.c.b16 %v910, %v908
        %v961 = vpack.c.b16 %v911, %v909
        %v962 = vpack.c.b16 %v914, %v912
        %v963 = vpack.c.b16 %v915, %v913
        %v964 = vpack.c.b16 %v918, %v916
        %v965 = vpack.c.b16 %v919, %v917
        %v966 = vpack.c.b16 %v922, %v920
        %v967 = vpack.c.b16 %v923, %v921
        %v968 = vpack.c.b16 %v926, %v924
        %v969 = vpack.c.b16 %v927, %v925
        %v970 = vpack.c.b16 %v930, %v928
        %v971 = vpack.c.b16 %v931, %v929
        %v972 = vpack.c.b16 %v934, %v932
        %v973 = vpack.c.b16 %v935, %v933
        %v974 = vpack.c.b16 %v938, %v936
        %v975 = vpack.c.b16 %v939, %v937
        %v976 = vpack.c.b16 %v942, %v940
        %v977 = vpack.c.b16 %v943, %v941
        %v978 = vpack.c.b16 %v946, %v944
        %v979 = vpack.c.b16 %v947, %v945
        %1012 = vmatprep.subr.bf16.mxu0 %v963
        %1013 = vmatpush1.bf16.msra.mxu0 %v962
        %1014 = vmatprep.subr.bf16.mxu0 %v961
        %1015 = vmatpush1.bf16.msra.mxu0 %v960
        %1016 = vmatprep.subr.bf16.mxu0 %v959
        %1017 = vmatpush1.bf16.msra.mxu0 %v958
        %1018 = vmatprep.subr.bf16.mxu0 %v957
        %1019 = vmatpush1.bf16.msra.mxu0 %v956
        %1020 = vmatprep.subr.bf16.mxu0 %v955
        %1021 = vmatpush1.bf16.msra.mxu0 %v954
        %1022 = vmatprep.subr.bf16.mxu0 %v953
        %1023 = vmatpush1.bf16.msra.mxu0 %v952
        %1024 = vmatprep.subr.bf16.mxu0 %v951
        %1025 = vmatpush1.bf16.msra.mxu0 %v950
        %1026 = vmatprep.subr.bf16.mxu0 %v949
        %1027 = vmatpush1.bf16.msra.mxu0 %v948
        %1028 = vmatprep.subr.bf16.mxu0 %v979
        %1029 = vmatpush2.bf16.msra.mxu0 %v978
        %1030 = vmatprep.subr.bf16.mxu0 %v977
        %1031 = vmatpush2.bf16.msra.mxu0 %v976
        %1032 = vmatprep.subr.bf16.mxu0 %v975
        %1033 = vmatpush2.bf16.msra.mxu0 %v974
        %1034 = vmatprep.subr.bf16.mxu0 %v973
        %1035 = vmatpush2.bf16.msra.mxu0 %v972
        %1036 = vmatprep.subr.bf16.mxu0 %v971
        %1037 = vmatpush2.bf16.msra.mxu0 %v970
        %1038 = vmatprep.subr.bf16.mxu0 %v969
        %1039 = vmatpush2.bf16.msra.mxu0 %v968
        %1040 = vmatprep.subr.bf16.mxu0 %v967
        %1041 = vmatpush2.bf16.msra.mxu0 %v966
        %1042 = vmatprep.subr.bf16.mxu0 %v965
        %1043 = vmatpush2.bf16.msra.mxu0 %v964
        %1044 = vmatprep.mubr.bf16.mxu0 %v819
        %1045 = vmatmul.mubr.bf16.gmra.mxu0 %v818
        %v1046 = vpop.f32.mrf.mxu0
        %v1047 = vadd.f32 0.0, %v1046
        %v1048 = vpop.f32.mrf.mxu0
        %v1049 = vadd.f32 0.0, %v1048
        %v1050 = vpop.f32.mrf.mxu0
        %v1051 = vadd.f32 0.0, %v1050
        %v1052 = vpop.f32.mrf.mxu0
        %v1053 = vadd.f32 0.0, %v1052
        %1054 = vdwg.mxu0
        %v1055 = vadd.f32 %v1047, %v1051
        %v1056 = vrot.slane %v1055, 4
        %v1057 = vadd.f32 %v1055, %v1056
        %v1058 = vrot.slane %v1057, 2
        %v1059 = vadd.f32 %v1057, %v1058
        %v1060 = vrot.slane %v1059, 1
        %v1061 = vadd.f32 %v1059, %v1060
        %v1062 = vadd.f32 %v1049, %v1053
        %v1063 = vrot.slane %v1062, 4
        %v1064 = vadd.f32 %v1062, %v1063
        %v1065 = vrot.slane %v1064, 2
        %v1066 = vadd.f32 %v1064, %v1065
        %v1067 = vrot.slane %v1066, 1
        %v1068 = vadd.f32 %v1066, %v1067
        %v1071 = vcombine.low %v1061, %v1068
        %v1073 = vunpack.c.l.s4 1966171168
        %v1074 = vunpack.c.0.s8 %v1073
        %v1075 = vlaneseq
        %v1076 = vshrl.u32 %v1075, 7
        %v1077 = vsub.s32 %v1074, %v1076
        %v1078 = vrot.slane %v1071, %v1077
        %v1080 = vunpack.c.l.s4 1966171168
        %v1081 = vunpack.c.0.s8 %v1080
        %v1082 = vlaneseq
        %v1083 = vshrl.u32 %v1082, 7
        %v1084 = vsub.s32 %v1081, %v1083
        %v1085 = vrot.slane %v1078, %v1084
        %v1087 = vlaneseq
        %vm1088 = vcmp.ge.s32.totalorder %v1087, 0
        %vm1089 = vcmp.lt.s32.totalorder %v1087, 256
        %vm1090 = vmand %vm1088, %vm1089
        %1091 = vst.msk [vmem:[%s310] sm:$0x3] %vm1090, %v1085
        %v1092 = vmul.f32 %v1047, %v1047
        %v1093 = vmul.f32 %v1049, %v1049
        %v1094 = vmul.f32 %v1051, %v1051
        %v1095 = vmul.f32 %v1053, %v1053
        %v1096 = vadd.f32 %v1092, %v1094
        %v1097 = vrot.slane %v1096, 4
        %v1098 = vadd.f32 %v1096, %v1097
        %v1099 = vrot.slane %v1098, 2
        %v1100 = vadd.f32 %v1098, %v1099
        %v1101 = vrot.slane %v1100, 1
        %v1102 = vadd.f32 %v1100, %v1101
        %v1103 = vadd.f32 %v1093, %v1095
        %v1104 = vrot.slane %v1103, 4
        %v1105 = vadd.f32 %v1103, %v1104
        %v1106 = vrot.slane %v1105, 2
        %v1107 = vadd.f32 %v1105, %v1106
        %v1108 = vrot.slane %v1107, 1
        %v1109 = vadd.f32 %v1107, %v1108
        %v1112 = vcombine.low %v1102, %v1109
        %v1114 = vunpack.c.l.s4 1966171168
        %v1115 = vunpack.c.0.s8 %v1114
        %v1116 = vlaneseq
        %v1117 = vshrl.u32 %v1116, 7
        %v1118 = vsub.s32 %v1115, %v1117
        %v1119 = vrot.slane %v1112, %v1118
        %v1121 = vunpack.c.l.s4 1966171168
        %v1122 = vunpack.c.0.s8 %v1121
        %v1123 = vlaneseq
        %v1124 = vshrl.u32 %v1123, 7
        %v1125 = vsub.s32 %v1122, %v1124
        %v1126 = vrot.slane %v1119, %v1125
        %1128 = vst.msk [vmem:[%s317] sm:$0x3] %vm1090, %v1126
        %v1129 = vpack.c.bf16 %v1051, %v1047
        %v1130 = vpack.c.bf16 %v1053, %v1049
        %v1133 = vunpack.c.l.b16 %v1129
        %v1134 = vunpack.c.l.b16 %v1130
        %v1135 = vunpack.c.h.b16 %v1129
        %v1136 = vunpack.c.h.b16 %v1130
        %v1137 = vpack.c.b16 %v1134, %v1133
        %v1138 = vpack.c.b16 %v1136, %v1135
        %1141 = vst [vmem:[%s303] sm:$0xff] %v1137
        %1142 = vst [vmem:[%s303 + $0x8] sm:$0xff] %v1138
        %s1143 = sand.u32 %s125, 1
        %s1144 = scalar_lea.sflag [#allocation4], %s1143
        %s1145 = sand.u32 %s125, 1
        %s1146 = smul.addr %s1145, 16
        %s1147 = scalar_lea.vmem [#allocation8], %s1146
        %s1148 = sand.u32 %s28, 1
        %s1149 = scalar_lea.sflag [#allocation10], %s1148
        %s1150 = sand.u32 %s151, 1
        %s1151 = smul.addr %s1150, 2
        %s1152 = scalar_lea.vmem [#allocation9], %s1151
        %s1153 = sand.u32 %s28, 1
        %s1154 = scalar_lea.sflag [#allocation10], %s1153
        %s1155 = sand.u32 %s177, 1
        %s1156 = smul.addr %s1155, 2
        %s1157 = scalar_lea.vmem [#allocation11], %s1156
        // Predicated region
        $region49: #{tpu_custom_call.1} parent=35 // pred_check
          %p1158 = pneg %p135
        $region50: #{tpu_custom_call.1} parent=35 // pred_check_branch
          %1160 = sbr.rel (%p1158) target = $region52
        $region51: #{tpu_custom_call.1} parent=35 // pred_region
          %s1161 = smul.u32 2, %s28
          %s1163 = ssub.s32 256, 256
          %1164 = vsyncadd %s1144, %s1163
          %s1165 = smul.addr %s1161, 2
          %s1166 = smul.addr %s1165, 64
          %s1167 = scalar_lea.hbm %s4, %s1166
          %s1168 = sshll.u32 %s1147, 4
          %s1169 = int_to_ptr.vmem [resolvable:$true] %s1168
          %1174 = dma.vmem_to_hbm [thread:$0]  %s1169, 256, %s1167, %s1144, 128, 128, 8
        $region52: #{tpu_custom_call.1} parent=35 // pred_fallthru
          _
        // Predicated region
        $region53: #{tpu_custom_call.1} parent=35 // pred_check
          %p1175 = pneg %p161
        $region54: #{tpu_custom_call.1} parent=35 // pred_check_branch
          %1177 = sbr.rel (%p1175) target = $region56
        $region55: #{tpu_custom_call.1} parent=35 // pred_region
          %s1179 = ssub.s32 32, 32
          %1180 = vsyncadd %s1149, %s1179
          %s1181 = smul.addr %s28, 2
          %s1182 = smul.addr %s1181, 16
          %s1183 = scalar_lea.hbm %s5, %s1182
          %s1185 = sshll.u32 %s1152, 4
          %s1186 = int_to_ptr.vmem [resolvable:$true] %s1185
          %1188 = dma.vmem_to_hbm [thread:$0]  %s1186, 32, %s1183, %s1149
        $region56: #{tpu_custom_call.1} parent=35 // pred_fallthru
          _
        // Predicated region
        $region57: #{tpu_custom_call.1} parent=35 // pred_check
          %p1189 = pneg %p187
        $region58: #{tpu_custom_call.1} parent=35 // pred_check_branch
          %1191 = sbr.rel (%p1189) target = $region60
        $region59: #{tpu_custom_call.1} parent=35 // pred_region
          %s1193 = ssub.s32 32, 32
          %1194 = vsyncadd %s1154, %s1193
          %s1195 = smul.addr %s28, 2
          %s1196 = smul.addr %s1195, 16
          %s1197 = scalar_lea.hbm %s6, %s1196
          %s1199 = sshll.u32 %s1157, 4
          %s1200 = int_to_ptr.vmem [resolvable:$true] %s1199
          %1202 = dma.vmem_to_hbm [thread:$0]  %s1200, 32, %s1197, %s1154
        $region60: #{tpu_custom_call.1} parent=35 // pred_fallthru
          _
      $region36: #{tpu_custom_call.1} parent=5 // pred_fallthru
        _
      %p1203 = scmp.le.s32.totalorder 2, %s23
      // Predicated region
      $region61: #{tpu_custom_call.1} parent=5 // pred_check
        %p1204 = pneg %p1203
      $region62: #{tpu_custom_call.1} parent=5 // pred_check_branch
        %1206 = sbr.rel (%p1204) target = $region64
      $region63: #{tpu_custom_call.1} parent=5 // pred_region
        %s1207 = ssub.s32 %s23, 2
        // Predicated region
        $region65: #{tpu_custom_call.1} parent=63 // pred_check
          %p1208 = pneg %p141
        $region66: #{tpu_custom_call.1} parent=63 // pred_check_branch
          %1210 = sbr.rel (%p1208) target = $region68
        $region67: #{tpu_custom_call.1} parent=63 // pred_region
          %s1211 = sand.u32 %s126, 1
          %s1212 = scalar_lea.sflag [#allocation4], %s1211
          %s1213 = sand.u32 %s126, 1
          %s1214 = smul.addr %s1213, 16
          %s1215 = scalar_lea.vmem [#allocation8], %s1214
          %1216 = dma.done %s1212, 256
        $region68: #{tpu_custom_call.1} parent=63 // pred_fallthru
          _
        // Predicated region
        $region69: #{tpu_custom_call.1} parent=63 // pred_check
          %p1217 = pneg %p167
        $region70: #{tpu_custom_call.1} parent=63 // pred_check_branch
          %1219 = sbr.rel (%p1217) target = $region72
        $region71: #{tpu_custom_call.1} parent=63 // pred_region
          %s1220 = sand.u32 %s29, 1
          %s1221 = scalar_lea.sflag [#allocation10], %s1220
          %s1222 = sand.u32 %s152, 1
          %s1223 = smul.addr %s1222, 2
          %s1224 = scalar_lea.vmem [#allocation9], %s1223
          %1225 = dma.done %s1221, 32
        $region72: #{tpu_custom_call.1} parent=63 // pred_fallthru
          _
        // Predicated region
        $region73: #{tpu_custom_call.1} parent=63 // pred_check
          %p1226 = pneg %p193
        $region74: #{tpu_custom_call.1} parent=63 // pred_check_branch
          %1228 = sbr.rel (%p1226) target = $region76
        $region75: #{tpu_custom_call.1} parent=63 // pred_region
          %s1229 = sand.u32 %s29, 1
          %s1230 = scalar_lea.sflag [#allocation10], %s1229
          %s1231 = sand.u32 %s178, 1
          %s1232 = smul.addr %s1231, 2
          %s1233 = scalar_lea.vmem [#allocation11], %s1232
          %1234 = dma.done %s1230, 32
        $region76: #{tpu_custom_call.1} parent=63 // pred_fallthru
          _
      $region64: #{tpu_custom_call.1} parent=5 // pred_fallthru
        _
    $region6: #{tpu_custom_call.1} parent=1 // loop_footer
      %s27 = sadd.s32 1, %s23
    $region7: #{tpu_custom_call.1} parent=1 // loop_footer_branch
      %22 = sbr.rel target = $region3
    $region8: #{tpu_custom_call.1} parent=1 // loop_exit
      _
    %1235 = vsyncpa [#allocation3], 1
    %s1236 = scalar_lea.sflag [#allocation3], 1
    %1237 = vsyncpa %s1236, 1
    %1238 = vsyncpa [#allocation6], 1
    %1239 = vsyncpa [#allocation4], 1
    %s1240 = scalar_lea.sflag [#allocation4], 1
    %1241 = vsyncpa %s1240, 1
    %1242 = vsyncpa [#allocation10], 1
    %s1243 = scalar_lea.sflag [#allocation10], 1
    %1244 = vsyncpa %s1243, 1

</llo_original>
